<compile_context>
chip_gen: v7x
topology: tpu7x:2x2x1
jax: 0.10.0
libtpu: 0.0.40
codegen_flags: <defaults>
</compile_context>

<pallas_src>
import functools
import math

import numpy as np
import jax
import jax.numpy as jnp
from jax.experimental import pallas as pl
from jax.experimental.pallas import tpu as pltpu

VMEM_LIMIT = 64 * 1024 * 1024   # explicit scoped-VMEM cap (safe on v5e/v6e/v7x)

# Tile targets (clamped to actual dims; real-size BERT would sweep these).
_ROW_TILE_TARGET = 256   # rows of (B*S, D) per grid step for row-parallel kernels
_Q_TILE_TARGET = 128     # query rows per attention grid step
_DFF_TILE_TARGET = 512   # d_ff contraction tile for the FFN weight slabs


def _pick_tile(dim, target, align):
    """Largest t <= min(target, dim) with dim % t == 0 and (t % align == 0 or t == dim)."""
    t = min(target, dim)
    for cand in range(t, 0, -1):
        if dim % cand == 0 and (cand % align == 0 or cand == dim):
            return cand
    return dim


def _layernorm(x, gamma, beta, eps=1e-5):
    mu = jnp.mean(x, axis=-1, keepdims=True)
    var = jnp.mean((x - mu) ** 2, axis=-1, keepdims=True)
    return (x - mu) * jax.lax.rsqrt(var + eps) * gamma + beta


# --------------------------------------------------------------------------
# Kernel 1: fused QKV projection over row tiles of (B*S, D).
# --------------------------------------------------------------------------
def qkv_kernel(x_ref, w_ref, b_ref, q_ref, k_ref, v_ref):
    # x: (TM, D) bf16, w: (D, 3D) bf16, b: (1, 3D) f32
    qkv = jnp.dot(x_ref[...], w_ref[...],
                  preferred_element_type=jnp.float32) + b_ref[...]
    qkv = qkv.astype(q_ref.dtype)
    D = q_ref.shape[-1]
    q_ref[...] = qkv[:, :D]
    k_ref[...] = qkv[:, D:2 * D]
    v_ref[...] = qkv[:, 2 * D:3 * D]


def qkv_proj(x2d, wqkv, bqkv):
    R, D = x2d.shape
    TM = _pick_tile(R, _ROW_TILE_TARGET, 8)
    out = jax.ShapeDtypeStruct((R, D), jnp.bfloat16)
    return pl.pallas_call(
        qkv_kernel,
        out_shape=(out, out, out),
        grid=(R // TM,),
        in_specs=[
            pl.BlockSpec((TM, D), lambda i: (i, 0)),
            pl.BlockSpec((D, 3 * D), lambda i: (0, 0)),
            pl.BlockSpec((1, 3 * D), lambda i: (0, 0)),
        ],
        out_specs=(
            pl.BlockSpec((TM, D), lambda i: (i, 0)),
            pl.BlockSpec((TM, D), lambda i: (i, 0)),
            pl.BlockSpec((TM, D), lambda i: (i, 0)),
        ),
        compiler_params=pltpu.CompilerParams(
            dimension_semantics=("parallel",),
            vmem_limit_bytes=VMEM_LIMIT),
    )(x2d, wqkv, bqkv)


# --------------------------------------------------------------------------
# Kernel 2: batched-head attention + output projection + residual + LayerNorm1.
# Grid: (batch, query tiles). K/V for the batch element stay resident per step.
# --------------------------------------------------------------------------
def attn_kernel(x_ref, q_ref, k_ref, v_ref, mb_ref, wo_ref, pk_ref, o_ref):
    q = q_ref[0]          # (H, TQ, dh) bf16
    k = k_ref[0]          # (H, S,  dh) bf16
    v = v_ref[0]          # (H, S,  dh) bf16
    mb = mb_ref[...]      # (1, S) f32 additive key-padding bias (0 or -1e9)
    dh = q.shape[-1]
    scale = 1.0 / math.sqrt(dh)

    # Batched-head attention scores, f32 accumulation on the MXU.
    s = jnp.einsum('hqd,hkd->hqk', q, k,
                   preferred_element_type=jnp.float32) * scale        # (H, TQ, S)
    s = s + mb                                                        # key-padding mask
    s = s - jnp.max(s, axis=-1, keepdims=True)
    p = jnp.exp(s)
    p = p * pl.reciprocal(jnp.sum(p, axis=-1, keepdims=True), approx=True)

    ctx = jnp.einsum('hqk,hkd->hqd', p.astype(v.dtype), v,
                     preferred_element_type=jnp.float32)              # (H, TQ, dh)

    # Output projection: per-head matmul against Wo[h] = (dh, D), then head-sum.
    proj = jnp.einsum('hqd,hde->hqe', ctx.astype(jnp.bfloat16), wo_ref[...],
                      preferred_element_type=jnp.float32)             # (H, TQ, D)
    pk = pk_ref[...]                                                  # (3, D): bo, ln1_g, ln1_b
    attn = jnp.sum(proj, axis=0) + pk[0:1, :]                         # (TQ, D)

    xres = x_ref[0].astype(jnp.float32)
    y = _layernorm(xres + attn, pk[1:2, :], pk[2:3, :])
    o_ref[0] = y.astype(o_ref.dtype)


def attention_block(x, q_h, k_h, v_h, mask_bias, wo_h, pk_attn):
    B, S, D = x.shape
    H, dh = wo_h.shape[0], wo_h.shape[1]
    TQ = _pick_tile(S, _Q_TILE_TARGET, 8)
    return pl.pallas_call(
        attn_kernel,
        out_shape=jax.ShapeDtypeStruct((B, S, D), jnp.bfloat16),
        grid=(B, S // TQ),
        in_specs=[
            pl.BlockSpec((1, TQ, D), lambda b, qi: (b, qi, 0)),       # x (residual)
            pl.BlockSpec((1, H, TQ, dh), lambda b, qi: (b, 0, qi, 0)),  # q (head-split)
            pl.BlockSpec((1, H, S, dh), lambda b, qi: (b, 0, 0, 0)),    # k
            pl.BlockSpec((1, H, S, dh), lambda b, qi: (b, 0, 0, 0)),    # v
            pl.BlockSpec((1, S), lambda b, qi: (b, 0)),               # mask bias
            pl.BlockSpec((H, dh, D), lambda b, qi: (0, 0, 0)),        # Wo as (H, dh, D)
            pl.BlockSpec((3, D), lambda b, qi: (0, 0)),               # [bo; ln1_g; ln1_b]
        ],
        out_specs=pl.BlockSpec((1, TQ, D), lambda b, qi: (b, qi, 0)),
        compiler_params=pltpu.CompilerParams(
            dimension_semantics=("parallel", "parallel"),
            vmem_limit_bytes=VMEM_LIMIT),
    )(x, q_h, k_h, v_h, mask_bias, wo_h, pk_attn)


# --------------------------------------------------------------------------
# Kernel 3: GELU feed-forward + residual + LayerNorm2.
# Grid: (row tiles, d_ff tiles); f32 accumulator across the d_ff axis.
# --------------------------------------------------------------------------
def ffn_kernel(y_ref, w1_ref, b1_ref, w2_ref, pk_ref, o_ref, acc_ref):
    j = pl.program_id(1)

    @pl.when(j == 0)
    def _():
        acc_ref[...] = jnp.zeros_like(acc_ref)

    y = y_ref[...]                                                    # (TM, D) bf16
    h1 = jnp.dot(y, w1_ref[...], preferred_element_type=jnp.float32) + b1_ref[...]
    # TODO(synk): tanh-approx GELU; PyTorch nn.GELU default is exact erf GELU (tiny drift).
    h1 = jax.nn.gelu(h1)
    acc_ref[...] += jnp.dot(h1.astype(jnp.bfloat16), w2_ref[...],
                            preferred_element_type=jnp.float32)

    @pl.when(j == pl.num_programs(1) - 1)
    def _():
        pk = pk_ref[...]                                              # (3, D): b2, ln2_g, ln2_b
        z = y.astype(jnp.float32) + acc_ref[...] + pk[0:1, :]
        o_ref[...] = _layernorm(z, pk[1:2, :], pk[2:3, :]).astype(o_ref.dtype)


def ffn_block(y2d, w1, b1, w2, pk_ffn):
    R, D = y2d.shape
    dff = w1.shape[1]
    TM = _pick_tile(R, _ROW_TILE_TARGET, 8)
    TDFF = _pick_tile(dff, _DFF_TILE_TARGET, 128)
    return pl.pallas_call(
        ffn_kernel,
        out_shape=jax.ShapeDtypeStruct((R, D), jnp.bfloat16),
        grid=(R // TM, dff // TDFF),
        in_specs=[
            pl.BlockSpec((TM, D), lambda i, j: (i, 0)),               # y (resident across j)
            pl.BlockSpec((D, TDFF), lambda i, j: (0, j)),             # W1 slab
            pl.BlockSpec((1, TDFF), lambda i, j: (0, j)),             # b1 slab
            pl.BlockSpec((TDFF, D), lambda i, j: (j, 0)),             # W2 slab
            pl.BlockSpec((3, D), lambda i, j: (0, 0)),                # [b2; ln2_g; ln2_b]
        ],
        out_specs=pl.BlockSpec((TM, D), lambda i, j: (i, 0)),
        scratch_shapes=[pltpu.VMEM((TM, D), jnp.float32)],
        compiler_params=pltpu.CompilerParams(
            dimension_semantics=("parallel", "arbitrary"),
            vmem_limit_bytes=VMEM_LIMIT),
    )(y2d, w1, b1, w2, pk_ffn)


# --------------------------------------------------------------------------
# One encoder layer = QKV kernel -> attention kernel -> FFN kernel.
# --------------------------------------------------------------------------
def encoder_layer(x, mask_bias, lp, nheads):
    B, S, D = x.shape
    dh = D // nheads
    R = B * S

    q, k, v = qkv_proj(x.reshape(R, D), lp["wqkv"], lp["bqkv"])

    # Head split done once per layer at the XLA level (no in-kernel relayouts).
    def split_heads(t):
        return t.reshape(B, S, nheads, dh).transpose(0, 2, 1, 3)      # (B, H, S, dh)

    y = attention_block(x, split_heads(q), split_heads(k), split_heads(v),
                        mask_bias, lp["wo_h"], lp["pk_attn"])
    z2d = ffn_block(y.reshape(R, D), lp["w1"], lp["b1"], lp["w2"], lp["pk_ffn"])
    return z2d.reshape(B, S, D)


# --------------------------------------------------------------------------
# Plain-JAX glue: embeddings (gather) and parameter construction.
# --------------------------------------------------------------------------
def sinusoidal_pos_encoding(seq_len, d_model):
    pos = np.arange(seq_len, dtype=np.float32)[:, None]
    i = np.arange(0, d_model, 2, dtype=np.float32)[None, :]
    angle = pos / np.power(10000.0, i / d_model)
    pe = np.zeros((seq_len, d_model), dtype=np.float32)
    pe[:, 0::2] = np.sin(angle)
    pe[:, 1::2] = np.cos(angle)
    return jnp.asarray(pe)


def init_params(key, vocab_size, d_model, d_ff, n_layers, seq_len, nheads):
    keys = jax.random.split(key, 2 + 8 * n_layers)
    params = {
        "tok_emb": jax.random.normal(keys[0], (vocab_size, d_model), jnp.float32) * 0.02,
        "seg_emb": jax.random.normal(keys[1], (3, d_model), jnp.float32) * 0.02,
        "pos_enc": sinusoidal_pos_encoding(seq_len, d_model),
        "layers": [],
    }
    dh = d_model // nheads
    ki = 2
    for _ in range(n_layers):
        lk = keys[ki:ki + 8]
        ki += 8
        wq = jax.random.normal(lk[0], (d_model, d_model), jnp.float32) * 0.02
        wk = jax.random.normal(lk[1], (d_model, d_model), jnp.float32) * 0.02
        wv = jax.random.normal(lk[2], (d_model, d_model), jnp.float32) * 0.02
        wo = jax.random.normal(lk[3], (d_model, d_model), jnp.float32) * 0.02
        lp = {
            # bf16 weights for the MXU path; f32 accumulation inside kernels.
            "wqkv": jnp.concatenate([wq, wk, wv], axis=1).astype(jnp.bfloat16),   # (D, 3D)
            "bqkv": jnp.zeros((1, 3 * d_model), jnp.float32),
            "wo_h": wo.reshape(nheads, dh, d_model).astype(jnp.bfloat16),         # (H, dh, D)
            # packed [bo; ln1_gamma; ln1_beta]
            "pk_attn": jnp.stack([jnp.zeros((d_model,), jnp.float32),
                                  jnp.ones((d_model,), jnp.float32),
                                  jnp.zeros((d_model,), jnp.float32)], axis=0),
            "w1": (jax.random.normal(lk[4], (d_model, d_ff), jnp.float32) * 0.02
                   ).astype(jnp.bfloat16),
            "b1": jnp.zeros((1, d_ff), jnp.float32),
            "w2": (jax.random.normal(lk[5], (d_ff, d_model), jnp.float32) * 0.02
                   ).astype(jnp.bfloat16),
            # packed [b2; ln2_gamma; ln2_beta]
            "pk_ffn": jnp.stack([jnp.zeros((d_model,), jnp.float32),
                                 jnp.ones((d_model,), jnp.float32),
                                 jnp.zeros((d_model,), jnp.float32)], axis=0),
        }
        params["layers"].append(lp)
    return params


def bert_forward(sequence, segment_label, params, nheads):
    # mask = (sequence == 0)  ->  additive key bias (0 for real token, -1e9 for pad)
    mask_bias = jnp.where(sequence == 0, -1e9, 0.0).astype(jnp.float32)   # (B, S)

    # InputEmbedding: token + segment + positional (dropout = identity in eval)
    tok = params["tok_emb"][sequence]                 # (B, S, D)
    seg = params["seg_emb"][segment_label]            # (B, S, D)
    pos = params["pos_enc"][None, :sequence.shape[1], :]
    x = (tok + seg + pos).astype(jnp.bfloat16)

    for lp in params["layers"]:
        x = encoder_layer(x, mask_bias, lp, nheads)
    return x.astype(jnp.float32)


# --------------------------------------------------------------------------
if __name__ == "__main__":
    # Small config, but large enough to exercise the row / query-tile grids.
    VOCAB, D_MODEL, NHEADS, N_LAYERS, SEQ_LEN, BATCH = 64, 32, 4, 2, 256, 2
    D_FF = 4 * D_MODEL

    root = jax.random.PRNGKey(0)
    kp, ks, kg = jax.random.split(root, 3)

    params = init_params(kp, VOCAB, D_MODEL, D_FF, N_LAYERS, SEQ_LEN, NHEADS)

    # Token ids in [1, VOCAB), with trailing padding zeros so the mask is exercised.
    sequence = jax.random.randint(ks, (BATCH, SEQ_LEN), 1, VOCAB, dtype=jnp.int32)
    pad = jnp.arange(SEQ_LEN)[None, :] >= jnp.array([[SEQ_LEN - 3], [SEQ_LEN - 5]])
    sequence = jnp.where(pad, 0, sequence)
    segment_label = jax.random.randint(kg, (BATCH, SEQ_LEN), 0, 2, dtype=jnp.int32)

    out = bert_forward(sequence, segment_label, params, NHEADS)
    out = jax.block_until_ready(out)

    assert out.shape == (BATCH, SEQ_LEN, D_MODEL)
    assert bool(jnp.all(jnp.isfinite(out)))
    print("KERNEL_OK")
</pallas_src>

<mosaic_0001>
module attributes {stable_mosaic.version = 11 : i64} {
  func.func @qkv_kernel(%arg0: i32, %arg1: memref<256x32xbf16, #tpu.memory_space<vmem>>, %arg2: memref<32x96xbf16, #tpu.memory_space<vmem>>, %arg3: memref<1x96xf32, #tpu.memory_space<vmem>>, %arg4: memref<256x32xbf16, #tpu.memory_space<vmem>>, %arg5: memref<256x32xbf16, #tpu.memory_space<vmem>>, %arg6: memref<256x32xbf16, #tpu.memory_space<vmem>>) attributes {dimension_semantics = [#tpu.dimension_semantics<parallel>], iteration_bounds = array<i64: 2>, scalar_prefetch = 0 : i64, scratch_operands = 0 : i64, tpu.core_type = #tpu.core_type<tc>, window_params = [{transform_indices = @transform_0, window_bounds = array<i64: 256, 32>}, {pipeline_mode = #tpu.pipeline_mode<synchronous>, transform_indices = @transform_1, window_bounds = array<i64: 32, 96>}, {pipeline_mode = #tpu.pipeline_mode<synchronous>, transform_indices = @transform_2, window_bounds = array<i64: 1, 96>}, {transform_indices = @transform_3, window_bounds = array<i64: 256, 32>}, {transform_indices = @transform_4, window_bounds = array<i64: 256, 32>}, {transform_indices = @transform_5, window_bounds = array<i64: 256, 32>}]} {
    %c0 = arith.constant 0 : index
    %c0_0 = arith.constant 0 : index
    %0 = vector.load %arg1[%c0, %c0_0] : memref<256x32xbf16, #tpu.memory_space<vmem>>, vector<256x32xbf16>
    %c0_1 = arith.constant 0 : index
    %c0_2 = arith.constant 0 : index
    %1 = vector.load %arg2[%c0_1, %c0_2] : memref<32x96xbf16, #tpu.memory_space<vmem>>, vector<32x96xbf16>
    %cst = arith.constant dense<0.000000e+00> : vector<256x96xf32>
    %2 = tpu.matmul %0, %1, %cst {dimension_numbers = #tpu.dot_dimension_numbers<[1], [0], [0], [1], [0, 0, 1, 1], [], []>} : vector<256x32xbf16>, vector<32x96xbf16>, vector<256x96xf32> -> vector<256x96xf32>
    %c0_3 = arith.constant 0 : index
    %c0_4 = arith.constant 0 : index
    %3 = vector.load %arg3[%c0_3, %c0_4] : memref<1x96xf32, #tpu.memory_space<vmem>>, vector<1x96xf32>
    %4 = vector.broadcast %3 : vector<1x96xf32> to vector<256x96xf32>
    %5 = arith.addf %2, %4 : vector<256x96xf32>
    %6 = arith.truncf %5 : vector<256x96xf32> to vector<256x96xbf16>
    %7 = vector.extract_strided_slice %6 {offsets = [0, 0], sizes = [256, 32], strides = [1, 1]} : vector<256x96xbf16> to vector<256x32xbf16>
    %c0_5 = arith.constant 0 : index
    %c0_6 = arith.constant 0 : index
    %8 = vector.load %arg4[%c0_5, %c0_6] : memref<256x32xbf16, #tpu.memory_space<vmem>>, vector<256x32xbf16>
    tpu.vector_store %arg4[%c0_5, %c0_6], %7 {strides = array<i32>} : memref<256x32xbf16, #tpu.memory_space<vmem>>, vector<256x32xbf16>,
    %9 = vector.extract_strided_slice %6 {offsets = [0, 32], sizes = [256, 32], strides = [1, 1]} : vector<256x96xbf16> to vector<256x32xbf16>
    %c0_7 = arith.constant 0 : index
    %c0_8 = arith.constant 0 : index
    %10 = vector.load %arg5[%c0_7, %c0_8] : memref<256x32xbf16, #tpu.memory_space<vmem>>, vector<256x32xbf16>
    tpu.vector_store %arg5[%c0_7, %c0_8], %9 {strides = array<i32>} : memref<256x32xbf16, #tpu.memory_space<vmem>>, vector<256x32xbf16>,
    %11 = vector.extract_strided_slice %6 {offsets = [0, 64], sizes = [256, 32], strides = [1, 1]} : vector<256x96xbf16> to vector<256x32xbf16>
    %c0_9 = arith.constant 0 : index
    %c0_10 = arith.constant 0 : index
    %12 = vector.load %arg6[%c0_9, %c0_10] : memref<256x32xbf16, #tpu.memory_space<vmem>>, vector<256x32xbf16>
    tpu.vector_store %arg6[%c0_9, %c0_10], %11 {strides = array<i32>} : memref<256x32xbf16, #tpu.memory_space<vmem>>, vector<256x32xbf16>,
    return
  }
  func.func @transform_0(%arg0: i32) -> (i32, i32) {
    %c0_i32 = arith.constant 0 : i32
    %c0_i32_0 = arith.constant 0 : i32
    return %arg0, %c0_i32 : i32, i32
  }
  func.func @transform_1(%arg0: i32) -> (i32, i32) {
    %c0_i32 = arith.constant 0 : i32
    %c0_i32_0 = arith.constant 0 : i32
    %c0_i32_1 = arith.constant 0 : i32
    return %c0_i32, %c0_i32_0 : i32, i32
  }
  func.func @transform_2(%arg0: i32) -> (i32, i32) {
    %c0_i32 = arith.constant 0 : i32
    %c0_i32_0 = arith.constant 0 : i32
    %c0_i32_1 = arith.constant 0 : i32
    return %c0_i32, %c0_i32_0 : i32, i32
  }
  func.func @transform_3(%arg0: i32) -> (i32, i32) {
    %c0_i32 = arith.constant 0 : i32
    %c0_i32_0 = arith.constant 0 : i32
    return %arg0, %c0_i32 : i32, i32
  }
  func.func @transform_4(%arg0: i32) -> (i32, i32) {
    %c0_i32 = arith.constant 0 : i32
    %c0_i32_0 = arith.constant 0 : i32
    return %arg0, %c0_i32 : i32, i32
  }
  func.func @transform_5(%arg0: i32) -> (i32, i32) {
    %c0_i32 = arith.constant 0 : i32
    %c0_i32_0 = arith.constant 0 : i32
    return %arg0, %c0_i32 : i32, i32
  }
}

</mosaic_0001>

<llo_original>
// kernel: tpu_custom_call.1
$region0: #{tpu_custom_call.1}
  #allocation0 [shape = 'u32[]', space=smem, size = 0x4, offset = 0x4, fixed_abs, tag = 'smem constant byte address 0x4 - core index']
  #allocation1 [shape = 'u32[144,128]{1,0:T(1,128)}', space=vmem, size = 0x12000, scoped, tag = 'internal scratch']
  %s0 = inlined_call_operand.hbm [shape: bf16[512,32], index: 0, kind: input, shape index: {}]
  %s1 = inlined_call_operand.hbm [shape: bf16[32,96], index: 1, kind: input, shape index: {}]
  %s2 = inlined_call_operand.hbm [shape: f32[1,96], index: 2, kind: input, shape index: {}]
  %s3 = inlined_call_operand.hbm [shape: bf16[512,32], index: 3, kind: output, shape index: {0}]
  %s4 = inlined_call_operand.hbm [shape: bf16[512,32], index: 4, kind: output, shape index: {1}]
  %s5 = inlined_call_operand.hbm [shape: bf16[512,32], index: 5, kind: output, shape index: {2}]
  %6 = xla_tuple %s3, %s4, %s5
  %s7 = sld [smem:[#allocation0]]
  $region73: #{tpu_custom_call.1} parent=0
    _
  %s9 = ssub.s32 1, %s7
  %s10 = scalar_select 0, %s9, %s7
  $region1: #{tpu_custom_call.1} parent=0
    #allocation2 [shape = 'u8[131072]{0}', space=vmem, size = 0x20000, scoped, tag = 'input window, operand 0']
    #allocation3 [shape = 's32[2]{0}', space=sflag, size = 0x8, scoped, tag = 'scoped memory for tpu_custom_call.1']
    #allocation4 [shape = 's32[2]{0}', space=sflag, size = 0x8, scoped, tag = 'scoped memory for tpu_custom_call.1']
    #allocation5 [shape = 'u8[8192]{0}', space=vmem, size = 0x2000, scoped, tag = 'input window, operand 1, single buffered']
    #allocation6 [shape = 's32[1]{0}', space=sflag, size = 0x4, scoped, tag = 'scoped memory for tpu_custom_call.1']
    #allocation7 [shape = 'u8[512]{0}', space=vmem, size = 0x400, scoped, tag = 'input window, operand 2, single buffered']
    #allocation8 [shape = 'u8[131072]{0}', space=vmem, size = 0x20000, scoped, tag = 'output window, operand 0']
    #allocation9 [shape = 'u8[131072]{0}', space=vmem, size = 0x20000, scoped, tag = 'output window, operand 1']
    #allocation10 [shape = 's32[2]{0}', space=sflag, size = 0x8, scoped, tag = 'scoped memory for tpu_custom_call.1']
    #allocation11 [shape = 'u8[131072]{0}', space=vmem, size = 0x20000, scoped, tag = 'output window, operand 2']
    %11 = vsyncpa [#allocation3], 0
    %s12 = scalar_lea.sflag [#allocation3], 1
    %13 = vsyncpa %s12, 0
    %14 = vsyncpa [#allocation6], 0
    %15 = vsyncpa [#allocation4], 0
    %s16 = scalar_lea.sflag [#allocation4], 1
    %17 = vsyncpa %s16, 0
    %18 = vsyncpa [#allocation10], 0
    %s19 = scalar_lea.sflag [#allocation10], 1
    %20 = vsyncpa %s19, 0
    loop: start=0, step=1, limit=4
    $region2: #{tpu_custom_call.1} parent=1 // loop_pre_header
      _
    $region3: #{tpu_custom_call.1} parent=1 // loop_header
      %s22 = sphi 0, %s26
      %p23 = scmp.ge.s32.totalorder %s22, 4
      %s32 = sphi 0, %s34
      %s35 = sphi 0, %s32
      %s36 = sphi 0, %s35
      %s52 = sphi 0, %s36
      %s56 = sphi 0, %s56
      %s58 = sphi 0, %s56
      %s59 = sphi 0, %s58
      %s73 = sphi 0, %s59
      %s77 = sphi 0, %s77
      %s79 = sphi 0, %s77
      %s80 = sphi 0, %s79
      %s94 = sphi 0, %s80
      %s100 = sphi 0, %s102
      %s103 = sphi 0, %s100
      %s104 = sphi 0, %s103
      %s120 = sphi 0, %s104
      %s126 = sphi 0, %s128
      %s129 = sphi 0, %s126
      %s130 = sphi 0, %s129
      %s146 = sphi 0, %s130
      %s152 = sphi 0, %s154
      %s155 = sphi 0, %s152
      %s156 = sphi 0, %s155
      %s172 = sphi 0, %s156
    $region4: #{tpu_custom_call.1} parent=1 // loop_header_branch
      %25 = sbr.rel (%p23) target = $region8
    $region5: #{tpu_custom_call.1} parent=1 // loop_body
      %s27 = ssub.s32 %s22, 1
      %s28 = ssub.s32 %s22, 2
      %s29 = sadd.s32 %s22, 1
      %s30 = ssub.s32 %s22, %s29
      %p31 = scmp.eq.s32.totalorder %s30, 0
      %s33 = sadd.s32 %s32, 1
      %s34 = scalar_select %p31, %s32, %s33
      %p37 = pneg %p31
      %p38 = scmp.eq.s32.totalorder %s22, 1
      %p39 = por %p37, %p38
      %p40 = scmp.ne.s32.totalorder %s32, %s35
      %p41 = scmp.eq.s32.totalorder %s22, 0
      %p42 = por %p40, %p41
      %p43 = scmp.ne.s32.totalorder %s32, %s35
      %p44 = scmp.eq.s32.totalorder %s27, 1
      %p45 = por %p43, %p44
      %p46 = scmp.ne.s32.totalorder %s35, %s36
      %p47 = scmp.eq.s32.totalorder %s27, 0
      %p48 = por %p46, %p47
      %p49 = scmp.ne.s32.totalorder %s35, %s36
      %p50 = scmp.eq.s32.totalorder %s28, 1
      %p51 = por %p49, %p50
      %p53 = scmp.ne.s32.totalorder %s36, %s52
      %p54 = scmp.eq.s32.totalorder %s28, 0
      %p55 = por %p53, %p54
      %s57 = sadd.s32 %s56, 1
      %p60 = scmp.eq.s32.totalorder %s22, 1
      %p61 = scmp.ne.s32.totalorder %s56, %s58
      %p62 = scmp.eq.s32.totalorder %s22, 0
      %p63 = por %p61, %p62
      %p64 = scmp.ne.s32.totalorder %s56, %s58
      %p65 = scmp.eq.s32.totalorder %s27, 1
      %p66 = por %p64, %p65
      %p67 = scmp.ne.s32.totalorder %s58, %s59
      %p68 = scmp.eq.s32.totalorder %s27, 0
      %p69 = por %p67, %p68
      %p70 = scmp.ne.s32.totalorder %s58, %s59
      %p71 = scmp.eq.s32.totalorder %s28, 1
      %p72 = por %p70, %p71
      %p74 = scmp.ne.s32.totalorder %s59, %s73
      %p75 = scmp.eq.s32.totalorder %s28, 0
      %p76 = por %p74, %p75
      %s78 = sadd.s32 %s77, 1
      %p81 = scmp.eq.s32.totalorder %s22, 1
      %p82 = scmp.ne.s32.totalorder %s77, %s79
      %p83 = scmp.eq.s32.totalorder %s22, 0
      %p84 = por %p82, %p83
      %p85 = scmp.ne.s32.totalorder %s77, %s79
      %p86 = scmp.eq.s32.totalorder %s27, 1
      %p87 = por %p85, %p86
      %p88 = scmp.ne.s32.totalorder %s79, %s80
      %p89 = scmp.eq.s32.totalorder %s27, 0
      %p90 = por %p88, %p89
      %p91 = scmp.ne.s32.totalorder %s79, %s80
      %p92 = scmp.eq.s32.totalorder %s28, 1
      %p93 = por %p91, %p92
      %p95 = scmp.ne.s32.totalorder %s80, %s94
      %p96 = scmp.eq.s32.totalorder %s28, 0
      %p97 = por %p95, %p96
      %s98 = ssub.s32 %s22, %s29
      %p99 = scmp.eq.s32.totalorder %s98, 0
      %s101 = sadd.s32 %s100, 1
      %s102 = scalar_select %p99, %s100, %s101
      %p105 = pneg %p99
      %p106 = scmp.eq.s32.totalorder %s22, 1
      %p107 = por %p105, %p106
      %p108 = scmp.ne.s32.totalorder %s100, %s103
      %p109 = scmp.eq.s32.totalorder %s22, 0
      %p110 = por %p108, %p109
      %p111 = scmp.ne.s32.totalorder %s100, %s103
      %p112 = scmp.eq.s32.totalorder %s27, 1
      %p113 = por %p111, %p112
      %p114 = scmp.ne.s32.totalorder %s103, %s104
      %p115 = scmp.eq.s32.totalorder %s27, 0
      %p116 = por %p114, %p115
      %p117 = scmp.ne.s32.totalorder %s103, %s104
      %p118 = scmp.eq.s32.totalorder %s28, 1
      %p119 = por %p117, %p118
      %p121 = scmp.ne.s32.totalorder %s104, %s120
      %p122 = scmp.eq.s32.totalorder %s28, 0
      %p123 = por %p121, %p122
      %s124 = ssub.s32 %s22, %s29
      %p125 = scmp.eq.s32.totalorder %s124, 0
      %s127 = sadd.s32 %s126, 1
      %s128 = scalar_select %p125, %s126, %s127
      %p131 = pneg %p125
      %p132 = scmp.eq.s32.totalorder %s22, 1
      %p133 = por %p131, %p132
      %p134 = scmp.ne.s32.totalorder %s126, %s129
      %p135 = scmp.eq.s32.totalorder %s22, 0
      %p136 = por %p134, %p135
      %p137 = scmp.ne.s32.totalorder %s126, %s129
      %p138 = scmp.eq.s32.totalorder %s27, 1
      %p139 = por %p137, %p138
      %p140 = scmp.ne.s32.totalorder %s129, %s130
      %p141 = scmp.eq.s32.totalorder %s27, 0
      %p142 = por %p140, %p141
      %p143 = scmp.ne.s32.totalorder %s129, %s130
      %p144 = scmp.eq.s32.totalorder %s28, 1
      %p145 = por %p143, %p144
      %p147 = scmp.ne.s32.totalorder %s130, %s146
      %p148 = scmp.eq.s32.totalorder %s28, 0
      %p149 = por %p147, %p148
      %s150 = ssub.s32 %s22, %s29
      %p151 = scmp.eq.s32.totalorder %s150, 0
      %s153 = sadd.s32 %s152, 1
      %s154 = scalar_select %p151, %s152, %s153
      %p157 = pneg %p151
      %p158 = scmp.eq.s32.totalorder %s22, 1
      %p159 = por %p157, %p158
      %p160 = scmp.ne.s32.totalorder %s152, %s155
      %p161 = scmp.eq.s32.totalorder %s22, 0
      %p162 = por %p160, %p161
      %p163 = scmp.ne.s32.totalorder %s152, %s155
      %p164 = scmp.eq.s32.totalorder %s27, 1
      %p165 = por %p163, %p164
      %p166 = scmp.ne.s32.totalorder %s155, %s156
      %p167 = scmp.eq.s32.totalorder %s27, 0
      %p168 = por %p166, %p167
      %p169 = scmp.ne.s32.totalorder %s155, %s156
      %p170 = scmp.eq.s32.totalorder %s28, 1
      %p171 = por %p169, %p170
      %p173 = scmp.ne.s32.totalorder %s156, %s172
      %p174 = scmp.eq.s32.totalorder %s28, 0
      %p175 = por %p173, %p174
      %p176 = scmp.le.s32.totalorder 1, %s22
      %p177 = scmp.lt.s32.totalorder %s22, 3
      %p178 = pnand %p176, %p177
      %p179 = pneg %p178
      // Predicated region
      $region9: #{tpu_custom_call.1} parent=5 // pred_check
        _
      $region10: #{tpu_custom_call.1} parent=5 // pred_check_branch
        %181 = sbr.rel (%p178) target = $region12
      $region11: #{tpu_custom_call.1} parent=5 // pred_region
        %s182 = ssub.s32 %s22, 1
        // Predicated region
        $region13: #{tpu_custom_call.1} parent=11 // pred_check
          %p183 = pneg %p69
        $region14: #{tpu_custom_call.1} parent=11 // pred_check_branch
          %185 = sbr.rel (%p183) target = $region16
        $region15: #{tpu_custom_call.1} parent=11 // pred_region
          %s187 = ssub.s32 256, 256
          %188 = vsyncadd [#allocation6], %s187
          %s189 = sshll.u32 [#allocation5], 4
          %s190 = int_to_ptr.vmem [resolvable:$true] %s189
          %195 = dma.hbm_to_vmem [thread:$0]  %s1, 256, %s190, [#allocation6], 64, 64, 4
        $region16: #{tpu_custom_call.1} parent=11 // pred_fallthru
          _
        // Predicated region
        $region17: #{tpu_custom_call.1} parent=11 // pred_check
          %p196 = pneg %p90
        $region18: #{tpu_custom_call.1} parent=11 // pred_check_branch
          %198 = sbr.rel (%p196) target = $region20
        $region19: #{tpu_custom_call.1} parent=11 // pred_region
          %s200 = ssub.s32 16, 16
          %201 = vsyncadd [#allocation6], %s200
          %s203 = sshll.u32 [#allocation7], 4
          %s204 = int_to_ptr.vmem [resolvable:$true] %s203
          %206 = dma.hbm_to_vmem [thread:$0]  %s2, 16, %s204, [#allocation6]
        $region20: #{tpu_custom_call.1} parent=11 // pred_fallthru
          _
      $region12: #{tpu_custom_call.1} parent=5 // pred_fallthru
        _
      %p207 = scmp.lt.s32.totalorder %s22, 2
      // Predicated region
      $region21: #{tpu_custom_call.1} parent=5 // pred_check
        %p208 = pneg %p207
      $region22: #{tpu_custom_call.1} parent=5 // pred_check_branch
        %210 = sbr.rel (%p208) target = $region24
      $region23: #{tpu_custom_call.1} parent=5 // pred_region
        // Predicated region
        $region25: #{tpu_custom_call.1} parent=23 // pred_check
          %p211 = pneg %p42
        $region26: #{tpu_custom_call.1} parent=23 // pred_check_branch
          %213 = sbr.rel (%p211) target = $region28
        $region27: #{tpu_custom_call.1} parent=23 // pred_region
          %s214 = sand.u32 %s32, 1
          %s215 = scalar_lea.sflag [#allocation3], %s214
          %s216 = sand.u32 %s32, 1
          %s217 = smul.addr %s216, 128
          %s218 = scalar_lea.vmem [#allocation2], %s217
          %s219 = smul.u32 32, %s22
          %s221 = ssub.s32 2048, 2048
          %222 = vsyncadd %s215, %s221
          %s223 = smul.addr %s219, 64
          %s224 = scalar_lea.hbm %s0, %s223
          %s225 = sshll.u32 %s218, 4
          %s226 = int_to_ptr.vmem [resolvable:$true] %s225
          %231 = dma.hbm_to_vmem [thread:$0]  %s224, 2048, %s226, %s215, 64, 64, 4
        $region28: #{tpu_custom_call.1} parent=23 // pred_fallthru
          _
      $region24: #{tpu_custom_call.1} parent=5 // pred_fallthru
        _
      %p232 = scmp.le.s32.totalorder 1, %s22
      %p233 = scmp.lt.s32.totalorder %s22, 3
      %p234 = pnand %p232, %p233
      %p235 = pneg %p234
      // Predicated region
      $region29: #{tpu_custom_call.1} parent=5 // pred_check
        _
      $region30: #{tpu_custom_call.1} parent=5 // pred_check_branch
        %237 = sbr.rel (%p234) target = $region32
      $region31: #{tpu_custom_call.1} parent=5 // pred_region
        %s238 = ssub.s32 %s22, 1
        %s239 = sand.u32 %s35, 1
        %s240 = scalar_lea.sflag [#allocation3], %s239
        %s241 = sand.u32 %s35, 1
        %s242 = smul.addr %s241, 128
        %s243 = scalar_lea.vmem [#allocation2], %s242
        // Predicated region
        $region33: #{tpu_custom_call.1} parent=31 // pred_check
          %p244 = pneg %p48
        $region34: #{tpu_custom_call.1} parent=31 // pred_check_branch
          %246 = sbr.rel (%p244) target = $region36
        $region35: #{tpu_custom_call.1} parent=31 // pred_region
          %247 = dma.done %s240, 2048
        $region36: #{tpu_custom_call.1} parent=31 // pred_fallthru
          _
        // Predicated region
        $region37: #{tpu_custom_call.1} parent=31 // pred_check
          %p248 = pneg %p69
        $region38: #{tpu_custom_call.1} parent=31 // pred_check_branch
          %250 = sbr.rel (%p248) target = $region40
        $region39: #{tpu_custom_call.1} parent=31 // pred_region
          %251 = dma.done [#allocation6], 256
        $region40: #{tpu_custom_call.1} parent=31 // pred_fallthru
          _
        // Predicated region
        $region41: #{tpu_custom_call.1} parent=31 // pred_check
          %p252 = pneg %p90
        $region42: #{tpu_custom_call.1} parent=31 // pred_check_branch
          %254 = sbr.rel (%p252) target = $region44
        $region43: #{tpu_custom_call.1} parent=31 // pred_region
          %255 = dma.done [#allocation6], 16
        $region44: #{tpu_custom_call.1} parent=31 // pred_fallthru
          _
        %s256 = sand.u32 %s35, 1
        %s257 = scalar_lea.sflag [#allocation3], %s256
        %s258 = sand.u32 %s35, 1
        %s259 = smul.addr %s258, 128
        %s260 = scalar_lea.vmem [#allocation2], %s259
        %p261 = pneg %p48
        %p262 = pneg %p45
        %p263 = pneg %p69
        %p264 = pneg %p66
        %p265 = pneg %p90
        %p266 = pneg %p87
        %p267 = pneg %p116
        %p268 = pneg %p113
        %s269 = sand.u32 %s103, 1
        %s270 = scalar_lea.sflag [#allocation4], %s269
        %s271 = sand.u32 %s103, 1
        %s272 = smul.addr %s271, 128
        %s273 = scalar_lea.vmem [#allocation8], %s272
        %p274 = pneg %p142
        %p275 = pneg %p139
        %s276 = sand.u32 %s27, 1
        %s277 = scalar_lea.sflag [#allocation10], %s276
        %s278 = sand.u32 %s129, 1
        %s279 = smul.addr %s278, 128
        %s280 = scalar_lea.vmem [#allocation9], %s279
        %p281 = pneg %p168
        %p282 = pneg %p165
        %s283 = sand.u32 %s27, 1
        %s284 = scalar_lea.sflag [#allocation10], %s283
        %s285 = sand.u32 %s155, 1
        %s286 = smul.addr %s285, 128
        %s287 = scalar_lea.vmem [#allocation11], %s286
        %s288 = smul.u32 32, %s27
        %s289 = smul.u32 32, %s27
        %s290 = smul.u32 32, %s27
        %s291 = smul.u32 32, %s27
        %v293 = vld [vmem:[%s243] sm:$0xf]
        %v294 = vld [vmem:[%s243 + $0x4] sm:$0xf]
        %v295 = vld [vmem:[%s243 + $0x8] sm:$0xf]
        %v296 = vld [vmem:[%s243 + $0xc] sm:$0xf]
        %v297 = vld [vmem:[%s243 + $0x10] sm:$0xf]
        %v298 = vld [vmem:[%s243 + $0x14] sm:$0xf]
        %v299 = vld [vmem:[%s243 + $0x18] sm:$0xf]
        %v300 = vld [vmem:[%s243 + $0x1c] sm:$0xf]
        %v301 = vld [vmem:[%s243 + $0x20] sm:$0xf]
        %v302 = vld [vmem:[%s243 + $0x24] sm:$0xf]
        %v303 = vld [vmem:[%s243 + $0x28] sm:$0xf]
        %v304 = vld [vmem:[%s243 + $0x2c] sm:$0xf]
        %v305 = vld [vmem:[%s243 + $0x30] sm:$0xf]
        %v306 = vld [vmem:[%s243 + $0x34] sm:$0xf]
        %v307 = vld [vmem:[%s243 + $0x38] sm:$0xf]
        %v308 = vld [vmem:[%s243 + $0x3c] sm:$0xf]
        %v309 = vld [vmem:[%s243 + $0x40] sm:$0xf]
        %v310 = vld [vmem:[%s243 + $0x44] sm:$0xf]
        %v311 = vld [vmem:[%s243 + $0x48] sm:$0xf]
        %v312 = vld [vmem:[%s243 + $0x4c] sm:$0xf]
        %v313 = vld [vmem:[%s243 + $0x50] sm:$0xf]
        %v314 = vld [vmem:[%s243 + $0x54] sm:$0xf]
        %v315 = vld [vmem:[%s243 + $0x58] sm:$0xf]
        %v316 = vld [vmem:[%s243 + $0x5c] sm:$0xf]
        %v317 = vld [vmem:[%s243 + $0x60] sm:$0xf]
        %v318 = vld [vmem:[%s243 + $0x64] sm:$0xf]
        %v319 = vld [vmem:[%s243 + $0x68] sm:$0xf]
        %v320 = vld [vmem:[%s243 + $0x6c] sm:$0xf]
        %v321 = vld [vmem:[%s243 + $0x70] sm:$0xf]
        %v322 = vld [vmem:[%s243 + $0x74] sm:$0xf]
        %v323 = vld [vmem:[%s243 + $0x78] sm:$0xf]
        %v324 = vld [vmem:[%s243 + $0x7c] sm:$0xf]
        %v325 = vld [vmem:[#allocation5] sm:$0xf]
        %v326 = vld [vmem:[#allocation5 + $0x4] sm:$0xf]
        %v327 = vld [vmem:[#allocation5 + $0x8] sm:$0xf]
        %v328 = vld [vmem:[#allocation5 + $0xc] sm:$0xf]
        %v329 = vld [vmem:[#allocation7] sm:$0x1]
        %v331 = vlaneseq
        %v332 = vshrl.u32 %v331, 7
        %v333 = vsub.s32 0, %v332
        %v334 = vrot.slane %v329, %v333
        %v368 = vunpack.c.l.b16 %v293
        %v369 = vunpack.c.l.b16 %v294
        %v370 = vunpack.c.l.b16 %v295
        %v371 = vunpack.c.l.b16 %v296
        %v372 = vunpack.c.l.b16 %v297
        %v373 = vunpack.c.l.b16 %v298
        %v374 = vunpack.c.l.b16 %v299
        %v375 = vunpack.c.l.b16 %v300
        %v376 = vunpack.c.l.b16 %v301
        %v377 = vunpack.c.l.b16 %v302
        %v378 = vunpack.c.l.b16 %v303
        %v379 = vunpack.c.l.b16 %v304
        %v380 = vunpack.c.l.b16 %v305
        %v381 = vunpack.c.l.b16 %v306
        %v382 = vunpack.c.l.b16 %v307
        %v383 = vunpack.c.l.b16 %v308
        %v384 = vunpack.c.l.b16 %v309
        %v385 = vunpack.c.l.b16 %v310
        %v386 = vunpack.c.l.b16 %v311
        %v387 = vunpack.c.l.b16 %v312
        %v388 = vunpack.c.l.b16 %v313
        %v389 = vunpack.c.l.b16 %v314
        %v390 = vunpack.c.l.b16 %v315
        %v391 = vunpack.c.l.b16 %v316
        %v392 = vunpack.c.l.b16 %v317
        %v393 = vunpack.c.l.b16 %v318
        %v394 = vunpack.c.l.b16 %v319
        %v395 = vunpack.c.l.b16 %v320
        %v396 = vunpack.c.l.b16 %v321
        %v397 = vunpack.c.l.b16 %v322
        %v398 = vunpack.c.l.b16 %v323
        %v399 = vunpack.c.l.b16 %v324
        %v400 = vpack.c.b16 %v369, %v368
        %v401 = vpack.c.b16 %v371, %v370
        %v402 = vpack.c.b16 %v373, %v372
        %v403 = vpack.c.b16 %v375, %v374
        %v404 = vpack.c.b16 %v377, %v376
        %v405 = vpack.c.b16 %v379, %v378
        %v406 = vpack.c.b16 %v381, %v380
        %v407 = vpack.c.b16 %v383, %v382
        %v408 = vpack.c.b16 %v385, %v384
        %v409 = vpack.c.b16 %v387, %v386
        %v410 = vpack.c.b16 %v389, %v388
        %v411 = vpack.c.b16 %v391, %v390
        %v412 = vpack.c.b16 %v393, %v392
        %v413 = vpack.c.b16 %v395, %v394
        %v414 = vpack.c.b16 %v397, %v396
        %v415 = vpack.c.b16 %v399, %v398
        %v420 = vunpack.c.l.b16 %v325
        %v421 = vunpack.c.l.b16 %v326
        %v422 = vunpack.c.l.b16 %v327
        %v423 = vunpack.c.l.b16 %v328
        %v424 = vpack.c.b16 %v421, %v420
        %v425 = vpack.c.b16 %v423, %v422
        %vm428 = vcmask 261120
        %v430 = vsel %vm428, %v400, 0
        %v433 = vsel %vm428, %v401, 0
        %v436 = vsel %vm428, %v402, 0
        %v439 = vsel %vm428, %v403, 0
        %v442 = vsel %vm428, %v404, 0
        %v445 = vsel %vm428, %v405, 0
        %v448 = vsel %vm428, %v406, 0
        %v451 = vsel %vm428, %v407, 0
        %v454 = vsel %vm428, %v408, 0
        %v457 = vsel %vm428, %v409, 0
        %v460 = vsel %vm428, %v410, 0
        %v463 = vsel %vm428, %v411, 0
        %v466 = vsel %vm428, %v412, 0
        %v469 = vsel %vm428, %v413, 0
        %v472 = vsel %vm428, %v414, 0
        %v475 = vsel %vm428, %v415, 0
        %477 = vmatprep.subr.bf16.mxu0 0
        %478 = vmatpush1.bf16.msra.mxu0 %v424
        %479 = vmatprep.subr.bf16.mxu0 0
        %480 = vmatpush1.bf16.msra.mxu0 %v425
        %481 = vmatprep.subr.bf16.mxu0 0
        %482 = vmatpush1.bf16.msra.mxu0 0
        %483 = vmatprep.subr.bf16.mxu0 0
        %484 = vmatpush1.bf16.msra.mxu0 0
        %485 = vmatprep.subr.bf16.mxu0 0
        %486 = vmatpush1.bf16.msra.mxu0 0
        %487 = vmatprep.subr.bf16.mxu0 0
        %488 = vmatpush1.bf16.msra.mxu0 0
        %489 = vmatprep.subr.bf16.mxu0 0
        %490 = vmatpush1.bf16.msra.mxu0 0
        %491 = vmatprep.subr.bf16.mxu0 0
        %492 = vmatpush1.bf16.msra.mxu0 0
        %493 = vmatprep.subr.bf16.mxu0 0
        %494 = vmatpush1.bf16.msra.mxu0 0
        %495 = vmatprep.subr.bf16.mxu0 0
        %496 = vmatpush1.bf16.msra.mxu0 0
        %497 = vmatprep.subr.bf16.mxu0 0
        %498 = vmatpush1.bf16.msra.mxu0 0
        %499 = vmatprep.subr.bf16.mxu0 0
        %500 = vmatpush1.bf16.msra.mxu0 0
        %501 = vmatprep.subr.bf16.mxu0 0
        %502 = vmatpush1.bf16.msra.mxu0 0
        %503 = vmatprep.subr.bf16.mxu0 0
        %504 = vmatpush1.bf16.msra.mxu0 0
        %505 = vmatprep.subr.bf16.mxu0 0
        %506 = vmatpush1.bf16.msra.mxu0 0
        %507 = vmatprep.subr.bf16.mxu0 0
        %508 = vmatpush1.bf16.msra.mxu0 0
        %509 = vmatprep.mubr.bf16.mxu0 0
        %510 = vmatmul.mubr.bf16.gmra.mrb[0].mxu0 %v430
        %v511 = vpop.f32.mrb[0].mxu0
        %v512 = vadd.f32 %v334, %v511
        %v513 = vpop.f32.mrb[0].mxu0
        %v514 = vpop.f32.mrb[0].mxu0
        %v515 = vadd.f32 %v334, %v514
        %v516 = vpop.f32.mrb[0].mxu0
        %517 = vmatprep.mubr.bf16.mxu0 0
        %518 = vmatmul.mubr.bf16.gmra.mrb[0].mxu0 %v433
        %v519 = vpop.f32.mrb[0].mxu0
        %v520 = vadd.f32 %v334, %v519
        %v521 = vpop.f32.mrb[0].mxu0
        %v522 = vpop.f32.mrb[0].mxu0
        %v523 = vadd.f32 %v334, %v522
        %v524 = vpop.f32.mrb[0].mxu0
        %525 = vmatprep.mubr.bf16.mxu0 0
        %526 = vmatmul.mubr.bf16.gmra.mrb[0].mxu0 %v436
        %v527 = vpop.f32.mrb[0].mxu0
        %v528 = vadd.f32 %v334, %v527
        %v529 = vpop.f32.mrb[0].mxu0
        %v530 = vpop.f32.mrb[0].mxu0
        %v531 = vadd.f32 %v334, %v530
        %v532 = vpop.f32.mrb[0].mxu0
        %533 = vmatprep.mubr.bf16.mxu0 0
        %534 = vmatmul.mubr.bf16.gmra.mrb[0].mxu0 %v439
        %v535 = vpop.f32.mrb[0].mxu0
        %v536 = vadd.f32 %v334, %v535
        %v537 = vpop.f32.mrb[0].mxu0
        %v538 = vpop.f32.mrb[0].mxu0
        %v539 = vadd.f32 %v334, %v538
        %v540 = vpop.f32.mrb[0].mxu0
        %541 = vmatprep.mubr.bf16.mxu0 0
        %542 = vmatmul.mubr.bf16.gmra.mrb[0].mxu0 %v442
        %v543 = vpop.f32.mrb[0].mxu0
        %v544 = vadd.f32 %v334, %v543
        %v545 = vpop.f32.mrb[0].mxu0
        %v546 = vpop.f32.mrb[0].mxu0
        %v547 = vadd.f32 %v334, %v546
        %v548 = vpop.f32.mrb[0].mxu0
        %549 = vmatprep.mubr.bf16.mxu0 0
        %550 = vmatmul.mubr.bf16.gmra.mrb[0].mxu0 %v445
        %v551 = vpop.f32.mrb[0].mxu0
        %v552 = vadd.f32 %v334, %v551
        %v553 = vpop.f32.mrb[0].mxu0
        %v554 = vpop.f32.mrb[0].mxu0
        %v555 = vadd.f32 %v334, %v554
        %v556 = vpop.f32.mrb[0].mxu0
        %557 = vmatprep.mubr.bf16.mxu0 0
        %558 = vmatmul.mubr.bf16.gmra.mrb[0].mxu0 %v448
        %v559 = vpop.f32.mrb[0].mxu0
        %v560 = vadd.f32 %v334, %v559
        %v561 = vpop.f32.mrb[0].mxu0
        %v562 = vpop.f32.mrb[0].mxu0
        %v563 = vadd.f32 %v334, %v562
        %v564 = vpop.f32.mrb[0].mxu0
        %565 = vmatprep.mubr.bf16.mxu0 0
        %566 = vmatmul.mubr.bf16.gmra.mrb[0].mxu0 %v451
        %v567 = vpop.f32.mrb[0].mxu0
        %v568 = vadd.f32 %v334, %v567
        %v569 = vpop.f32.mrb[0].mxu0
        %v570 = vpop.f32.mrb[0].mxu0
        %v571 = vadd.f32 %v334, %v570
        %v572 = vpop.f32.mrb[0].mxu0
        %573 = vmatprep.mubr.bf16.mxu0 0
        %574 = vmatmul.mubr.bf16.gmra.mrb[0].mxu0 %v454
        %v575 = vpop.f32.mrb[0].mxu0
        %v576 = vadd.f32 %v334, %v575
        %v577 = vpop.f32.mrb[0].mxu0
        %v578 = vpop.f32.mrb[0].mxu0
        %v579 = vadd.f32 %v334, %v578
        %v580 = vpop.f32.mrb[0].mxu0
        %581 = vmatprep.mubr.bf16.mxu0 0
        %582 = vmatmul.mubr.bf16.gmra.mrb[0].mxu0 %v457
        %v583 = vpop.f32.mrb[0].mxu0
        %v584 = vadd.f32 %v334, %v583
        %v585 = vpop.f32.mrb[0].mxu0
        %v586 = vpop.f32.mrb[0].mxu0
        %v587 = vadd.f32 %v334, %v586
        %v588 = vpop.f32.mrb[0].mxu0
        %589 = vmatprep.mubr.bf16.mxu0 0
        %590 = vmatmul.mubr.bf16.gmra.mrb[0].mxu0 %v460
        %v591 = vpop.f32.mrb[0].mxu0
        %v592 = vadd.f32 %v334, %v591
        %v593 = vpop.f32.mrb[0].mxu0
        %v594 = vpop.f32.mrb[0].mxu0
        %v595 = vadd.f32 %v334, %v594
        %v596 = vpop.f32.mrb[0].mxu0
        %597 = vmatprep.mubr.bf16.mxu0 0
        %598 = vmatmul.mubr.bf16.gmra.mrb[0].mxu0 %v463
        %v599 = vpop.f32.mrb[0].mxu0
        %v600 = vadd.f32 %v334, %v599
        %v601 = vpop.f32.mrb[0].mxu0
        %v602 = vpop.f32.mrb[0].mxu0
        %v603 = vadd.f32 %v334, %v602
        %v604 = vpop.f32.mrb[0].mxu0
        %605 = vmatprep.mubr.bf16.mxu0 0
        %606 = vmatmul.mubr.bf16.gmra.mrb[0].mxu0 %v466
        %v607 = vpop.f32.mrb[0].mxu0
        %v608 = vadd.f32 %v334, %v607
        %v609 = vpop.f32.mrb[0].mxu0
        %v610 = vpop.f32.mrb[0].mxu0
        %v611 = vadd.f32 %v334, %v610
        %v612 = vpop.f32.mrb[0].mxu0
        %613 = vmatprep.mubr.bf16.mxu0 0
        %614 = vmatmul.mubr.bf16.gmra.mrb[0].mxu0 %v469
        %v615 = vpop.f32.mrb[0].mxu0
        %v616 = vadd.f32 %v334, %v615
        %v617 = vpop.f32.mrb[0].mxu0
        %v618 = vpop.f32.mrb[0].mxu0
        %v619 = vadd.f32 %v334, %v618
        %v620 = vpop.f32.mrb[0].mxu0
        %621 = vmatprep.mubr.bf16.mxu0 0
        %622 = vmatmul.mubr.bf16.gmra.mrb[0].mxu0 %v472
        %v623 = vpop.f32.mrb[0].mxu0
        %v624 = vadd.f32 %v334, %v623
        %v625 = vpop.f32.mrb[0].mxu0
        %v626 = vpop.f32.mrb[0].mxu0
        %v627 = vadd.f32 %v334, %v626
        %v628 = vpop.f32.mrb[0].mxu0
        %629 = vmatprep.mubr.bf16.mxu0 0
        %630 = vmatmul.mubr.bf16.gmra.mrb[0].mxu0 %v475
        %v631 = vpop.f32.mrb[0].mxu0
        %v632 = vadd.f32 %v334, %v631
        %v633 = vpop.f32.mrb[0].mxu0
        %v634 = vpop.f32.mrb[0].mxu0
        %v635 = vadd.f32 %v334, %v634
        %v636 = vpop.f32.mrb[0].mxu0
        %637 = vdwg.mxu0
        %v638 = vpack.c.bf16 %v515, %v512
        %v639 = vpack.c.bf16 %v523, %v520
        %v640 = vpack.c.bf16 %v531, %v528
        %v641 = vpack.c.bf16 %v539, %v536
        %v642 = vpack.c.bf16 %v547, %v544
        %v643 = vpack.c.bf16 %v555, %v552
        %v644 = vpack.c.bf16 %v563, %v560
        %v645 = vpack.c.bf16 %v571, %v568
        %v646 = vpack.c.bf16 %v579, %v576
        %v647 = vpack.c.bf16 %v587, %v584
        %v648 = vpack.c.bf16 %v595, %v592
        %v649 = vpack.c.bf16 %v603, %v600
        %v650 = vpack.c.bf16 %v611, %v608
        %v651 = vpack.c.bf16 %v619, %v616
        %v652 = vpack.c.bf16 %v627, %v624
        %v653 = vpack.c.bf16 %v635, %v632
        %v670 = vunpack.c.l.b16 %v638
        %v671 = vunpack.c.h.b16 %v638
        %v672 = vunpack.c.l.b16 %v639
        %v673 = vunpack.c.h.b16 %v639
        %v674 = vunpack.c.l.b16 %v640
        %v675 = vunpack.c.h.b16 %v640
        %v676 = vunpack.c.l.b16 %v641
        %v677 = vunpack.c.h.b16 %v641
        %v678 = vunpack.c.l.b16 %v642
        %v679 = vunpack.c.h.b16 %v642
        %v680 = vunpack.c.l.b16 %v643
        %v681 = vunpack.c.h.b16 %v643
        %v682 = vunpack.c.l.b16 %v644
        %v683 = vunpack.c.h.b16 %v644
        %v684 = vunpack.c.l.b16 %v645
        %v685 = vunpack.c.h.b16 %v645
        %v686 = vunpack.c.l.b16 %v646
        %v687 = vunpack.c.h.b16 %v646
        %v688 = vunpack.c.l.b16 %v647
        %v689 = vunpack.c.h.b16 %v647
        %v690 = vunpack.c.l.b16 %v648
        %v691 = vunpack.c.h.b16 %v648
        %v692 = vunpack.c.l.b16 %v649
        %v693 = vunpack.c.h.b16 %v649
        %v694 = vunpack.c.l.b16 %v650
        %v695 = vunpack.c.h.b16 %v650
        %v696 = vunpack.c.l.b16 %v651
        %v697 = vunpack.c.h.b16 %v651
        %v698 = vunpack.c.l.b16 %v652
        %v699 = vunpack.c.h.b16 %v652
        %v700 = vunpack.c.l.b16 %v653
        %v701 = vunpack.c.h.b16 %v653
        %v702 = vpack.c.b16 %v670, %v670
        %v703 = vpack.c.b16 %v671, %v671
        %v704 = vpack.c.b16 %v672, %v672
        %v705 = vpack.c.b16 %v673, %v673
        %v706 = vpack.c.b16 %v674, %v674
        %v707 = vpack.c.b16 %v675, %v675
        %v708 = vpack.c.b16 %v676, %v676
        %v709 = vpack.c.b16 %v677, %v677
        %v710 = vpack.c.b16 %v678, %v678
        %v711 = vpack.c.b16 %v679, %v679
        %v712 = vpack.c.b16 %v680, %v680
        %v713 = vpack.c.b16 %v681, %v681
        %v714 = vpack.c.b16 %v682, %v682
        %v715 = vpack.c.b16 %v683, %v683
        %v716 = vpack.c.b16 %v684, %v684
        %v717 = vpack.c.b16 %v685, %v685
        %v718 = vpack.c.b16 %v686, %v686
        %v719 = vpack.c.b16 %v687, %v687
        %v720 = vpack.c.b16 %v688, %v688
        %v721 = vpack.c.b16 %v689, %v689
        %v722 = vpack.c.b16 %v690, %v690
        %v723 = vpack.c.b16 %v691, %v691
        %v724 = vpack.c.b16 %v692, %v692
        %v725 = vpack.c.b16 %v693, %v693
        %v726 = vpack.c.b16 %v694, %v694
        %v727 = vpack.c.b16 %v695, %v695
        %v728 = vpack.c.b16 %v696, %v696
        %v729 = vpack.c.b16 %v697, %v697
        %v730 = vpack.c.b16 %v698, %v698
        %v731 = vpack.c.b16 %v699, %v699
        %v732 = vpack.c.b16 %v700, %v700
        %v733 = vpack.c.b16 %v701, %v701
        %vm766 = vcmask 257024
        %767 = vst.msk [vmem:[%s273] sm:$0xf] %vm766, %v702
        %768 = vst.msk [vmem:[%s273 + $0x4] sm:$0xf] %vm766, %v703
        %769 = vst.msk [vmem:[%s273 + $0x8] sm:$0xf] %vm766, %v704
        %770 = vst.msk [vmem:[%s273 + $0xc] sm:$0xf] %vm766, %v705
        %771 = vst.msk [vmem:[%s273 + $0x10] sm:$0xf] %vm766, %v706
        %772 = vst.msk [vmem:[%s273 + $0x14] sm:$0xf] %vm766, %v707
        %773 = vst.msk [vmem:[%s273 + $0x18] sm:$0xf] %vm766, %v708
        %774 = vst.msk [vmem:[%s273 + $0x1c] sm:$0xf] %vm766, %v709
        %775 = vst.msk [vmem:[%s273 + $0x20] sm:$0xf] %vm766, %v710
        %776 = vst.msk [vmem:[%s273 + $0x24] sm:$0xf] %vm766, %v711
        %777 = vst.msk [vmem:[%s273 + $0x28] sm:$0xf] %vm766, %v712
        %778 = vst.msk [vmem:[%s273 + $0x2c] sm:$0xf] %vm766, %v713
        %779 = vst.msk [vmem:[%s273 + $0x30] sm:$0xf] %vm766, %v714
        %780 = vst.msk [vmem:[%s273 + $0x34] sm:$0xf] %vm766, %v715
        %781 = vst.msk [vmem:[%s273 + $0x38] sm:$0xf] %vm766, %v716
        %782 = vst.msk [vmem:[%s273 + $0x3c] sm:$0xf] %vm766, %v717
        %783 = vst.msk [vmem:[%s273 + $0x40] sm:$0xf] %vm766, %v718
        %784 = vst.msk [vmem:[%s273 + $0x44] sm:$0xf] %vm766, %v719
        %785 = vst.msk [vmem:[%s273 + $0x48] sm:$0xf] %vm766, %v720
        %786 = vst.msk [vmem:[%s273 + $0x4c] sm:$0xf] %vm766, %v721
        %787 = vst.msk [vmem:[%s273 + $0x50] sm:$0xf] %vm766, %v722
        %788 = vst.msk [vmem:[%s273 + $0x54] sm:$0xf] %vm766, %v723
        %789 = vst.msk [vmem:[%s273 + $0x58] sm:$0xf] %vm766, %v724
        %790 = vst.msk [vmem:[%s273 + $0x5c] sm:$0xf] %vm766, %v725
        %791 = vst.msk [vmem:[%s273 + $0x60] sm:$0xf] %vm766, %v726
        %792 = vst.msk [vmem:[%s273 + $0x64] sm:$0xf] %vm766, %v727
        %793 = vst.msk [vmem:[%s273 + $0x68] sm:$0xf] %vm766, %v728
        %794 = vst.msk [vmem:[%s273 + $0x6c] sm:$0xf] %vm766, %v729
        %795 = vst.msk [vmem:[%s273 + $0x70] sm:$0xf] %vm766, %v730
        %796 = vst.msk [vmem:[%s273 + $0x74] sm:$0xf] %vm766, %v731
        %797 = vst.msk [vmem:[%s273 + $0x78] sm:$0xf] %vm766, %v732
        %798 = vst.msk [vmem:[%s273 + $0x7c] sm:$0xf] %vm766, %v733
        %799 = vrot.lane.b32.xlu0 %v702, 96
        %v800 = vpop.permute.xlu0 %799
        %801 = vrot.lane.b32.xlu0 %v703, 96
        %v802 = vpop.permute.xlu0 %801
        %803 = vrot.lane.b32.xlu0 %v704, 96
        %v804 = vpop.permute.xlu0 %803
        %805 = vrot.lane.b32.xlu0 %v705, 96
        %v806 = vpop.permute.xlu0 %805
        %807 = vrot.lane.b32.xlu0 %v706, 96
        %v808 = vpop.permute.xlu0 %807
        %809 = vrot.lane.b32.xlu0 %v707, 96
        %v810 = vpop.permute.xlu0 %809
        %811 = vrot.lane.b32.xlu0 %v708, 96
        %v812 = vpop.permute.xlu0 %811
        %813 = vrot.lane.b32.xlu0 %v709, 96
        %v814 = vpop.permute.xlu0 %813
        %815 = vrot.lane.b32.xlu0 %v710, 96
        %v816 = vpop.permute.xlu0 %815
        %817 = vrot.lane.b32.xlu0 %v711, 96
        %v818 = vpop.permute.xlu0 %817
        %819 = vrot.lane.b32.xlu0 %v712, 96
        %v820 = vpop.permute.xlu0 %819
        %821 = vrot.lane.b32.xlu0 %v713, 96
        %v822 = vpop.permute.xlu0 %821
        %823 = vrot.lane.b32.xlu0 %v714, 96
        %v824 = vpop.permute.xlu0 %823
        %825 = vrot.lane.b32.xlu0 %v715, 96
        %v826 = vpop.permute.xlu0 %825
        %827 = vrot.lane.b32.xlu0 %v716, 96
        %v828 = vpop.permute.xlu0 %827
        %829 = vrot.lane.b32.xlu0 %v717, 96
        %v830 = vpop.permute.xlu0 %829
        %831 = vrot.lane.b32.xlu0 %v718, 96
        %v832 = vpop.permute.xlu0 %831
        %833 = vrot.lane.b32.xlu0 %v719, 96
        %v834 = vpop.permute.xlu0 %833
        %835 = vrot.lane.b32.xlu0 %v720, 96
        %v836 = vpop.permute.xlu0 %835
        %837 = vrot.lane.b32.xlu0 %v721, 96
        %v838 = vpop.permute.xlu0 %837
        %839 = vrot.lane.b32.xlu0 %v722, 96
        %v840 = vpop.permute.xlu0 %839
        %841 = vrot.lane.b32.xlu0 %v723, 96
        %v842 = vpop.permute.xlu0 %841
        %843 = vrot.lane.b32.xlu0 %v724, 96
        %v844 = vpop.permute.xlu0 %843
        %845 = vrot.lane.b32.xlu0 %v725, 96
        %v846 = vpop.permute.xlu0 %845
        %847 = vrot.lane.b32.xlu0 %v726, 96
        %v848 = vpop.permute.xlu0 %847
        %849 = vrot.lane.b32.xlu0 %v727, 96
        %v850 = vpop.permute.xlu0 %849
        %851 = vrot.lane.b32.xlu0 %v728, 96
        %v852 = vpop.permute.xlu0 %851
        %853 = vrot.lane.b32.xlu0 %v729, 96
        %v854 = vpop.permute.xlu0 %853
        %855 = vrot.lane.b32.xlu0 %v730, 96
        %v856 = vpop.permute.xlu0 %855
        %857 = vrot.lane.b32.xlu0 %v731, 96
        %v858 = vpop.permute.xlu0 %857
        %859 = vrot.lane.b32.xlu0 %v732, 96
        %v860 = vpop.permute.xlu0 %859
        %861 = vrot.lane.b32.xlu0 %v733, 96
        %v862 = vpop.permute.xlu0 %861
        %895 = vst.msk [vmem:[%s280] sm:$0xf] %vm766, %v800
        %896 = vst.msk [vmem:[%s280 + $0x4] sm:$0xf] %vm766, %v802
        %897 = vst.msk [vmem:[%s280 + $0x8] sm:$0xf] %vm766, %v804
        %898 = vst.msk [vmem:[%s280 + $0xc] sm:$0xf] %vm766, %v806
        %899 = vst.msk [vmem:[%s280 + $0x10] sm:$0xf] %vm766, %v808
        %900 = vst.msk [vmem:[%s280 + $0x14] sm:$0xf] %vm766, %v810
        %901 = vst.msk [vmem:[%s280 + $0x18] sm:$0xf] %vm766, %v812
        %902 = vst.msk [vmem:[%s280 + $0x1c] sm:$0xf] %vm766, %v814
        %903 = vst.msk [vmem:[%s280 + $0x20] sm:$0xf] %vm766, %v816
        %904 = vst.msk [vmem:[%s280 + $0x24] sm:$0xf] %vm766, %v818
        %905 = vst.msk [vmem:[%s280 + $0x28] sm:$0xf] %vm766, %v820
        %906 = vst.msk [vmem:[%s280 + $0x2c] sm:$0xf] %vm766, %v822
        %907 = vst.msk [vmem:[%s280 + $0x30] sm:$0xf] %vm766, %v824
        %908 = vst.msk [vmem:[%s280 + $0x34] sm:$0xf] %vm766, %v826
        %909 = vst.msk [vmem:[%s280 + $0x38] sm:$0xf] %vm766, %v828
        %910 = vst.msk [vmem:[%s280 + $0x3c] sm:$0xf] %vm766, %v830
        %911 = vst.msk [vmem:[%s280 + $0x40] sm:$0xf] %vm766, %v832
        %912 = vst.msk [vmem:[%s280 + $0x44] sm:$0xf] %vm766, %v834
        %913 = vst.msk [vmem:[%s280 + $0x48] sm:$0xf] %vm766, %v836
        %914 = vst.msk [vmem:[%s280 + $0x4c] sm:$0xf] %vm766, %v838
        %915 = vst.msk [vmem:[%s280 + $0x50] sm:$0xf] %vm766, %v840
        %916 = vst.msk [vmem:[%s280 + $0x54] sm:$0xf] %vm766, %v842
        %917 = vst.msk [vmem:[%s280 + $0x58] sm:$0xf] %vm766, %v844
        %918 = vst.msk [vmem:[%s280 + $0x5c] sm:$0xf] %vm766, %v846
        %919 = vst.msk [vmem:[%s280 + $0x60] sm:$0xf] %vm766, %v848
        %920 = vst.msk [vmem:[%s280 + $0x64] sm:$0xf] %vm766, %v850
        %921 = vst.msk [vmem:[%s280 + $0x68] sm:$0xf] %vm766, %v852
        %922 = vst.msk [vmem:[%s280 + $0x6c] sm:$0xf] %vm766, %v854
        %923 = vst.msk [vmem:[%s280 + $0x70] sm:$0xf] %vm766, %v856
        %924 = vst.msk [vmem:[%s280 + $0x74] sm:$0xf] %vm766, %v858
        %925 = vst.msk [vmem:[%s280 + $0x78] sm:$0xf] %vm766, %v860
        %926 = vst.msk [vmem:[%s280 + $0x7c] sm:$0xf] %vm766, %v862
        %927 = vrot.lane.b32.xlu0 %v702, 64
        %v928 = vpop.permute.xlu0 %927
        %929 = vrot.lane.b32.xlu0 %v703, 64
        %v930 = vpop.permute.xlu0 %929
        %931 = vrot.lane.b32.xlu0 %v704, 64
        %v932 = vpop.permute.xlu0 %931
        %933 = vrot.lane.b32.xlu0 %v705, 64
        %v934 = vpop.permute.xlu0 %933
        %935 = vrot.lane.b32.xlu0 %v706, 64
        %v936 = vpop.permute.xlu0 %935
        %937 = vrot.lane.b32.xlu0 %v707, 64
        %v938 = vpop.permute.xlu0 %937
        %939 = vrot.lane.b32.xlu0 %v708, 64
        %v940 = vpop.permute.xlu0 %939
        %941 = vrot.lane.b32.xlu0 %v709, 64
        %v942 = vpop.permute.xlu0 %941
        %943 = vrot.lane.b32.xlu0 %v710, 64
        %v944 = vpop.permute.xlu0 %943
        %945 = vrot.lane.b32.xlu0 %v711, 64
        %v946 = vpop.permute.xlu0 %945
        %947 = vrot.lane.b32.xlu0 %v712, 64
        %v948 = vpop.permute.xlu0 %947
        %949 = vrot.lane.b32.xlu0 %v713, 64
        %v950 = vpop.permute.xlu0 %949
        %951 = vrot.lane.b32.xlu0 %v714, 64
        %v952 = vpop.permute.xlu0 %951
        %953 = vrot.lane.b32.xlu0 %v715, 64
        %v954 = vpop.permute.xlu0 %953
        %955 = vrot.lane.b32.xlu0 %v716, 64
        %v956 = vpop.permute.xlu0 %955
        %957 = vrot.lane.b32.xlu0 %v717, 64
        %v958 = vpop.permute.xlu0 %957
        %959 = vrot.lane.b32.xlu0 %v718, 64
        %v960 = vpop.permute.xlu0 %959
        %961 = vrot.lane.b32.xlu0 %v719, 64
        %v962 = vpop.permute.xlu0 %961
        %963 = vrot.lane.b32.xlu0 %v720, 64
        %v964 = vpop.permute.xlu0 %963
        %965 = vrot.lane.b32.xlu0 %v721, 64
        %v966 = vpop.permute.xlu0 %965
        %967 = vrot.lane.b32.xlu0 %v722, 64
        %v968 = vpop.permute.xlu0 %967
        %969 = vrot.lane.b32.xlu0 %v723, 64
        %v970 = vpop.permute.xlu0 %969
        %971 = vrot.lane.b32.xlu0 %v724, 64
        %v972 = vpop.permute.xlu0 %971
        %973 = vrot.lane.b32.xlu0 %v725, 64
        %v974 = vpop.permute.xlu0 %973
        %975 = vrot.lane.b32.xlu0 %v726, 64
        %v976 = vpop.permute.xlu0 %975
        %977 = vrot.lane.b32.xlu0 %v727, 64
        %v978 = vpop.permute.xlu0 %977
        %979 = vrot.lane.b32.xlu0 %v728, 64
        %v980 = vpop.permute.xlu0 %979
        %981 = vrot.lane.b32.xlu0 %v729, 64
        %v982 = vpop.permute.xlu0 %981
        %983 = vrot.lane.b32.xlu0 %v730, 64
        %v984 = vpop.permute.xlu0 %983
        %985 = vrot.lane.b32.xlu0 %v731, 64
        %v986 = vpop.permute.xlu0 %985
        %987 = vrot.lane.b32.xlu0 %v732, 64
        %v988 = vpop.permute.xlu0 %987
        %989 = vrot.lane.b32.xlu0 %v733, 64
        %v990 = vpop.permute.xlu0 %989
        %1023 = vst.msk [vmem:[%s287] sm:$0xf] %vm766, %v928
        %1024 = vst.msk [vmem:[%s287 + $0x4] sm:$0xf] %vm766, %v930
        %1025 = vst.msk [vmem:[%s287 + $0x8] sm:$0xf] %vm766, %v932
        %1026 = vst.msk [vmem:[%s287 + $0xc] sm:$0xf] %vm766, %v934
        %1027 = vst.msk [vmem:[%s287 + $0x10] sm:$0xf] %vm766, %v936
        %1028 = vst.msk [vmem:[%s287 + $0x14] sm:$0xf] %vm766, %v938
        %1029 = vst.msk [vmem:[%s287 + $0x18] sm:$0xf] %vm766, %v940
        %1030 = vst.msk [vmem:[%s287 + $0x1c] sm:$0xf] %vm766, %v942
        %1031 = vst.msk [vmem:[%s287 + $0x20] sm:$0xf] %vm766, %v944
        %1032 = vst.msk [vmem:[%s287 + $0x24] sm:$0xf] %vm766, %v946
        %1033 = vst.msk [vmem:[%s287 + $0x28] sm:$0xf] %vm766, %v948
        %1034 = vst.msk [vmem:[%s287 + $0x2c] sm:$0xf] %vm766, %v950
        %1035 = vst.msk [vmem:[%s287 + $0x30] sm:$0xf] %vm766, %v952
        %1036 = vst.msk [vmem:[%s287 + $0x34] sm:$0xf] %vm766, %v954
        %1037 = vst.msk [vmem:[%s287 + $0x38] sm:$0xf] %vm766, %v956
        %1038 = vst.msk [vmem:[%s287 + $0x3c] sm:$0xf] %vm766, %v958
        %1039 = vst.msk [vmem:[%s287 + $0x40] sm:$0xf] %vm766, %v960
        %1040 = vst.msk [vmem:[%s287 + $0x44] sm:$0xf] %vm766, %v962
        %1041 = vst.msk [vmem:[%s287 + $0x48] sm:$0xf] %vm766, %v964
        %1042 = vst.msk [vmem:[%s287 + $0x4c] sm:$0xf] %vm766, %v966
        %1043 = vst.msk [vmem:[%s287 + $0x50] sm:$0xf] %vm766, %v968
        %1044 = vst.msk [vmem:[%s287 + $0x54] sm:$0xf] %vm766, %v970
        %1045 = vst.msk [vmem:[%s287 + $0x58] sm:$0xf] %vm766, %v972
        %1046 = vst.msk [vmem:[%s287 + $0x5c] sm:$0xf] %vm766, %v974
        %1047 = vst.msk [vmem:[%s287 + $0x60] sm:$0xf] %vm766, %v976
        %1048 = vst.msk [vmem:[%s287 + $0x64] sm:$0xf] %vm766, %v978
        %1049 = vst.msk [vmem:[%s287 + $0x68] sm:$0xf] %vm766, %v980
        %1050 = vst.msk [vmem:[%s287 + $0x6c] sm:$0xf] %vm766, %v982
        %1051 = vst.msk [vmem:[%s287 + $0x70] sm:$0xf] %vm766, %v984
        %1052 = vst.msk [vmem:[%s287 + $0x74] sm:$0xf] %vm766, %v986
        %1053 = vst.msk [vmem:[%s287 + $0x78] sm:$0xf] %vm766, %v988
        %1054 = vst.msk [vmem:[%s287 + $0x7c] sm:$0xf] %vm766, %v990
        %s1055 = sand.u32 %s103, 1
        %s1056 = scalar_lea.sflag [#allocation4], %s1055
        %s1057 = sand.u32 %s103, 1
        %s1058 = smul.addr %s1057, 128
        %s1059 = scalar_lea.vmem [#allocation8], %s1058
        %s1060 = sand.u32 %s27, 1
        %s1061 = scalar_lea.sflag [#allocation10], %s1060
        %s1062 = sand.u32 %s129, 1
        %s1063 = smul.addr %s1062, 128
        %s1064 = scalar_lea.vmem [#allocation9], %s1063
        %s1065 = sand.u32 %s27, 1
        %s1066 = scalar_lea.sflag [#allocation10], %s1065
        %s1067 = sand.u32 %s155, 1
        %s1068 = smul.addr %s1067, 128
        %s1069 = scalar_lea.vmem [#allocation11], %s1068
        // Predicated region
        $region45: #{tpu_custom_call.1} parent=31 // pred_check
          %p1070 = pneg %p113
        $region46: #{tpu_custom_call.1} parent=31 // pred_check_branch
          %1072 = sbr.rel (%p1070) target = $region48
        $region47: #{tpu_custom_call.1} parent=31 // pred_region
          %s1073 = smul.u32 32, %s27
          %s1075 = ssub.s32 2048, 2048
          %1076 = vsyncadd %s1056, %s1075
          %s1077 = smul.addr %s1073, 64
          %s1078 = scalar_lea.hbm %s3, %s1077
          %s1079 = sshll.u32 %s1059, 4
          %s1080 = int_to_ptr.vmem [resolvable:$true] %s1079
          %1085 = dma.vmem_to_hbm [thread:$0]  %s1080, 2048, %s1078, %s1056, 64, 64, 4
        $region48: #{tpu_custom_call.1} parent=31 // pred_fallthru
          _
        // Predicated region
        $region49: #{tpu_custom_call.1} parent=31 // pred_check
          %p1086 = pneg %p139
        $region50: #{tpu_custom_call.1} parent=31 // pred_check_branch
          %1088 = sbr.rel (%p1086) target = $region52
        $region51: #{tpu_custom_call.1} parent=31 // pred_region
          %s1089 = smul.u32 32, %s27
          %s1091 = ssub.s32 2048, 2048
          %1092 = vsyncadd %s1061, %s1091
          %s1093 = smul.addr %s1089, 64
          %s1094 = scalar_lea.hbm %s4, %s1093
          %s1095 = sshll.u32 %s1064, 4
          %s1096 = int_to_ptr.vmem [resolvable:$true] %s1095
          %1101 = dma.vmem_to_hbm [thread:$0]  %s1096, 2048, %s1094, %s1061, 64, 64, 4
        $region52: #{tpu_custom_call.1} parent=31 // pred_fallthru
          _
        // Predicated region
        $region53: #{tpu_custom_call.1} parent=31 // pred_check
          %p1102 = pneg %p165
        $region54: #{tpu_custom_call.1} parent=31 // pred_check_branch
          %1104 = sbr.rel (%p1102) target = $region56
        $region55: #{tpu_custom_call.1} parent=31 // pred_region
          %s1105 = smul.u32 32, %s27
          %s1107 = ssub.s32 2048, 2048
          %1108 = vsyncadd %s1066, %s1107
          %s1109 = smul.addr %s1105, 64
          %s1110 = scalar_lea.hbm %s5, %s1109
          %s1111 = sshll.u32 %s1069, 4
          %s1112 = int_to_ptr.vmem [resolvable:$true] %s1111
          %1117 = dma.vmem_to_hbm [thread:$0]  %s1112, 2048, %s1110, %s1066, 64, 64, 4
        $region56: #{tpu_custom_call.1} parent=31 // pred_fallthru
          _
      $region32: #{tpu_custom_call.1} parent=5 // pred_fallthru
        _
      %p1118 = scmp.le.s32.totalorder 2, %s22
      // Predicated region
      $region57: #{tpu_custom_call.1} parent=5 // pred_check
        %p1119 = pneg %p1118
      $region58: #{tpu_custom_call.1} parent=5 // pred_check_branch
        %1121 = sbr.rel (%p1119) target = $region60
      $region59: #{tpu_custom_call.1} parent=5 // pred_region
        %s1122 = ssub.s32 %s22, 2
        // Predicated region
        $region61: #{tpu_custom_call.1} parent=59 // pred_check
          %p1123 = pneg %p119
        $region62: #{tpu_custom_call.1} parent=59 // pred_check_branch
          %1125 = sbr.rel (%p1123) target = $region64
        $region63: #{tpu_custom_call.1} parent=59 // pred_region
          %s1126 = sand.u32 %s104, 1
          %s1127 = scalar_lea.sflag [#allocation4], %s1126
          %s1128 = sand.u32 %s104, 1
          %s1129 = smul.addr %s1128, 128
          %s1130 = scalar_lea.vmem [#allocation8], %s1129
          %1131 = dma.done %s1127, 2048
        $region64: #{tpu_custom_call.1} parent=59 // pred_fallthru
          _
        // Predicated region
        $region65: #{tpu_custom_call.1} parent=59 // pred_check
          %p1132 = pneg %p145
        $region66: #{tpu_custom_call.1} parent=59 // pred_check_branch
          %1134 = sbr.rel (%p1132) target = $region68
        $region67: #{tpu_custom_call.1} parent=59 // pred_region
          %s1135 = sand.u32 %s28, 1
          %s1136 = scalar_lea.sflag [#allocation10], %s1135
          %s1137 = sand.u32 %s130, 1
          %s1138 = smul.addr %s1137, 128
          %s1139 = scalar_lea.vmem [#allocation9], %s1138
          %1140 = dma.done %s1136, 2048
        $region68: #{tpu_custom_call.1} parent=59 // pred_fallthru
          _
        // Predicated region
        $region69: #{tpu_custom_call.1} parent=59 // pred_check
          %p1141 = pneg %p171
        $region70: #{tpu_custom_call.1} parent=59 // pred_check_branch
          %1143 = sbr.rel (%p1141) target = $region72
        $region71: #{tpu_custom_call.1} parent=59 // pred_region
          %s1144 = sand.u32 %s28, 1
          %s1145 = scalar_lea.sflag [#allocation10], %s1144
          %s1146 = sand.u32 %s156, 1
          %s1147 = smul.addr %s1146, 128
          %s1148 = scalar_lea.vmem [#allocation11], %s1147
          %1149 = dma.done %s1145, 2048
        $region72: #{tpu_custom_call.1} parent=59 // pred_fallthru
          _
      $region60: #{tpu_custom_call.1} parent=5 // pred_fallthru
        _
    $region6: #{tpu_custom_call.1} parent=1 // loop_footer
      %s26 = sadd.s32 1, %s22
    $region7: #{tpu_custom_call.1} parent=1 // loop_footer_branch
      %21 = sbr.rel target = $region3
    $region8: #{tpu_custom_call.1} parent=1 // loop_exit
      _
    %1150 = vsyncpa [#allocation3], 1
    %s1151 = scalar_lea.sflag [#allocation3], 1
    %1152 = vsyncpa %s1151, 1
    %1153 = vsyncpa [#allocation6], 1
    %1154 = vsyncpa [#allocation4], 1
    %s1155 = scalar_lea.sflag [#allocation4], 1
    %1156 = vsyncpa %s1155, 1
    %1157 = vsyncpa [#allocation10], 1
    %s1158 = scalar_lea.sflag [#allocation10], 1
    %1159 = vsyncpa %s1158, 1

</llo_original>
